<compile_context>
chip_gen: v6e
topology: v6e:2x2x1
jax: 0.10.0
libtpu: 0.0.40
codegen_flags: <defaults>
</compile_context>

<pallas_src>
import functools
import math

import numpy as np
import jax
import jax.numpy as jnp
from jax.experimental import pallas as pl
from jax.experimental.pallas import tpu as pltpu

_LANE = 128
_SUBLANE = 8


# --------------------------------------------------------------------------
# Kernels
# --------------------------------------------------------------------------
def _kl_normal_kernel(p_mu_ref, q_mu_ref, p_sig_ref, q_sig_ref, out_ref,
                      *, n, tn, need_mask):
    # grid = (batch_tiles [parallel], feature_tiles [arbitrary, innermost]).
    # out_ref is a (b_blk, 1) accumulator resident across the feature axis.
    k = pl.program_id(1)

    @pl.when(k == 0)
    def _():
        out_ref[...] = jnp.zeros_like(out_ref)

    e = jnp.float32(1e-10)
    p_mu = p_mu_ref[...].astype(jnp.float32)
    q_mu = q_mu_ref[...].astype(jnp.float32)
    p_sig = p_sig_ref[...].astype(jnp.float32)
    q_sig = q_sig_ref[...].astype(jnp.float32)

    if need_mask:
        col = k * tn + jax.lax.broadcasted_iota(jnp.int32, p_mu.shape, 1)
        mask = col < n
        # sanitize BEFORE reciprocal/log so out-of-range lanes stay finite
        q_sig = jnp.where(mask, q_sig, 1.0)
        p_sig = jnp.where(mask, p_sig, 1.0)

    inv_q = pl.reciprocal(q_sig + e)          # one EUP recip, reused twice
    term1 = (p_mu - q_mu) * inv_q
    term2 = p_sig * inv_q
    loss = 0.5 * (term1 * term1 + term2 * term2) - 0.5 - jnp.log(term2 + e)
    if need_mask:
        loss = jnp.where(mask, loss, 0.0)
    out_ref[...] += jnp.sum(loss, axis=-1, keepdims=True)


def _kl_laplace_kernel(p_mu_ref, q_mu_ref, p_b_ref, q_b_ref, out_ref,
                       *, n, tn, need_mask):
    k = pl.program_id(1)

    @pl.when(k == 0)
    def _():
        out_ref[...] = jnp.zeros_like(out_ref)

    e = jnp.float32(1e-10)
    p_mu = p_mu_ref[...].astype(jnp.float32)
    q_mu = q_mu_ref[...].astype(jnp.float32)
    p_b = p_b_ref[...].astype(jnp.float32)
    q_b = q_b_ref[...].astype(jnp.float32)

    if need_mask:
        col = k * tn + jax.lax.broadcasted_iota(jnp.int32, p_mu.shape, 1)
        mask = col < n
        q_b = jnp.where(mask, q_b, 1.0)
        p_b = jnp.where(mask, p_b, 1.0)

    # eps placement matches the PyTorch reference exactly:
    #   term1 = log(q_b / (p_b + e) + e)
    #   term2 = (p_b^2 + (p_mu - q_mu)^2) / (2*q_b^2 + e)
    inv_pb = pl.reciprocal(p_b + e)
    inv_den = pl.reciprocal(2.0 * q_b * q_b + e)
    diff = p_mu - q_mu
    term1 = jnp.log(q_b * inv_pb + e)
    term2 = (p_b * p_b + diff * diff) * inv_den
    loss = term1 + term2 - 0.5
    if need_mask:
        loss = jnp.where(mask, loss, 0.0)
    out_ref[...] += jnp.sum(loss, axis=-1, keepdims=True)


# --------------------------------------------------------------------------
# Wrapper
# --------------------------------------------------------------------------
def _choose_layout(B, n):
    """Fold the batch for vreg fill and pick block sizes inside a safe VMEM budget."""
    # Fold (B, n) -> (B*r, n/r) when B under-fills the 8 sublanes (free reshape).
    r = 1
    if B % _SUBLANE != 0:
        cand = _SUBLANE // math.gcd(B, _SUBLANE)
        if n % cand == 0:
            r = cand
    Bf, nf = B * r, n // r

    # Batch block: multiple of 8 dividing Bf, else the full (small) batch.
    if Bf % _SUBLANE == 0:
        b_blk = min(Bf, 64)
        while Bf % b_blk != 0:
            b_blk -= _SUBLANE
    else:
        b_blk = Bf

    # Feature tile: multiple of 128, sized so 4 inputs x 2 buffers x f32 block
    # stays <= ~8 MiB (fits v5e's 16 MiB scoped VMEM; trivially fits v6e/v7x).
    budget_bytes = 8 * 1024 * 1024
    max_tn = budget_bytes // (4 * 2 * 4 * b_blk)
    max_tn = max(_LANE, (max_tn // _LANE) * _LANE)
    nf_ceil = ((nf + _LANE - 1) // _LANE) * _LANE
    tn = min(max_tn, 8192, nf_ceil)
    return r, Bf, nf, b_blk, tn


def _per_example_kl(kernel_fn, p_mu, q_mu, p_scale, q_scale):
    """Per-example summed KL, shape (B,). Inputs are NCHW (any float dtype)."""
    B = p_mu.shape[0]
    n = int(np.prod(p_mu.shape[1:]))
    r, Bf, nf, b_blk, tn = _choose_layout(B, n)
    need_mask = (nf % tn) != 0

    def flat(x):
        # contiguous reshape only; keep native dtype (bf16 stays bf16 in HBM)
        return x.reshape(Bf, nf)

    p_mu_f, q_mu_f = flat(p_mu), flat(q_mu)
    p_sc_f, q_sc_f = flat(p_scale), flat(q_scale)

    in_spec = pl.BlockSpec((b_blk, tn), lambda b, k: (b, k))
    out = pl.pallas_call(
        functools.partial(kernel_fn, n=nf, tn=tn, need_mask=need_mask),
        out_shape=jax.ShapeDtypeStruct((Bf, 1), jnp.float32),
        grid_spec=pltpu.PrefetchScalarGridSpec(
            num_scalar_prefetch=0,
            grid=(Bf // b_blk, pl.cdiv(nf, tn)),
            in_specs=[in_spec, in_spec, in_spec, in_spec],
            out_specs=pl.BlockSpec((b_blk, 1), lambda b, k: (b, 0)),
        ),
        compiler_params=pltpu.CompilerParams(
            dimension_semantics=("parallel", "arbitrary")),
    )(p_mu_f, q_mu_f, p_sc_f, q_sc_f)

    per_fold = out[:, 0].reshape(B, r)
    return jnp.sum(per_fold, axis=1)


class KLDivergence:
    """JAX/Pallas port of the PyTorch KLDivergence module (Efficient-VDVAE)."""

    def __init__(self, data_shape):
        self.data_shape = data_shape

    def __call__(self, prior, posterior, global_batch_size=128, kind="normal"):
        """prior / posterior are dicts with 'mean' and 'stddev' arrays (NCHW)."""
        if kind == "normal":
            kernel = _kl_normal_kernel
        elif kind == "laplace":
            kernel = _kl_laplace_kernel
        else:
            raise ValueError(
                "KL Divergence loss is only implemented for Normal and Laplace")

        per_example_loss = _per_example_kl(
            kernel,
            posterior["mean"], prior["mean"],
            posterior["stddev"], prior["stddev"],
        )
        n_mean_elems = float(np.prod(posterior["mean"].shape[1:]))
        avg_per_example_loss = per_example_loss / n_mean_elems

        scalar = global_batch_size * float(np.prod(self.data_shape))
        loss = jnp.sum(per_example_loss) / scalar
        avg_loss = jnp.sum(avg_per_example_loss) / (global_batch_size * np.log(2))
        return loss, avg_loss


# --------------------------------------------------------------------------
# Demo / self-check
# --------------------------------------------------------------------------
def _ref_losses(prior, posterior, data_shape, gbs, kind):
    e = 1e-10
    p_mu, q_mu = posterior["mean"], prior["mean"]
    p_s, q_s = posterior["stddev"], prior["stddev"]
    if kind == "normal":
        t1 = (p_mu - q_mu) / (q_s + e)
        t2 = p_s / (q_s + e)
        elem = 0.5 * (t1 * t1 + t2 * t2) - 0.5 - jnp.log(t2 + e)
    else:
        t1 = jnp.log(q_s / (p_s + e) + e)
        t2 = (p_s * p_s + (p_mu - q_mu) ** 2) / (2.0 * q_s * q_s + e)
        elem = t1 + t2 - 0.5
    B = p_mu.shape[0]
    per_ex = jnp.sum(elem.reshape(B, -1), axis=-1)
    n_elems = float(np.prod(p_mu.shape[1:]))
    loss = jnp.sum(per_ex) / (gbs * float(np.prod(data_shape)))
    avg = jnp.sum(per_ex / n_elems) / (gbs * np.log(2))
    return loss, avg


def _make_params(key, shape):
    k1, k2, k3, k4 = jax.random.split(key, 4)
    posterior = {
        "mean": jax.random.normal(k1, shape, jnp.float32),
        "stddev": jnp.exp(0.3 * jax.random.normal(k2, shape, jnp.float32)),
    }
    prior = {
        "mean": jax.random.normal(k3, shape, jnp.float32),
        "stddev": jnp.exp(0.3 * jax.random.normal(k4, shape, jnp.float32)),
    }
    return prior, posterior


if __name__ == "__main__":
    key = jax.random.PRNGKey(0)
    ka, kb = jax.random.split(key)

    # Case 1: lane-aligned features (no mask path), normal KL.
    B, C, H, W = 2, 4, 16, 16
    prior, posterior = _make_params(ka, (B, C, H, W))
    kl = KLDivergence(data_shape=(C, H, W))
    loss, avg_loss = kl(prior, posterior, global_batch_size=128, kind="normal")
    jax.block_until_ready((loss, avg_loss))
    ref_loss, ref_avg = _ref_losses(prior, posterior, (C, H, W), 128, "normal")
    assert np.allclose(np.asarray(loss), np.asarray(ref_loss), rtol=1e-5, atol=1e-5)
    assert np.allclose(np.asarray(avg_loss), np.asarray(ref_avg), rtol=1e-5, atol=1e-5)

    # Case 2: ragged features (exercises in-kernel mask + batch fold), laplace KL.
    B2, C2, H2, W2 = 2, 4, 10, 10
    prior2, posterior2 = _make_params(kb, (B2, C2, H2, W2))
    kl2 = KLDivergence(data_shape=(C2, H2, W2))
    loss2, avg2 = kl2(prior2, posterior2, global_batch_size=128, kind="laplace")
    jax.block_until_ready((loss2, avg2))
    ref_loss2, ref_avg2 = _ref_losses(prior2, posterior2, (C2, H2, W2), 128, "laplace")
    assert np.allclose(np.asarray(loss2), np.asarray(ref_loss2), rtol=1e-5, atol=1e-5)
    assert np.allclose(np.asarray(avg2), np.asarray(ref_avg2), rtol=1e-5, atol=1e-5)

    print("KERNEL_OK")
</pallas_src>

<mosaic_0001>
module attributes {stable_mosaic.version = 11 : i64} {
  func.func @_kl_normal_kernel(%arg0: i32, %arg1: i32, %arg2: memref<8x256xf32, #tpu.memory_space<vmem>>, %arg3: memref<8x256xf32, #tpu.memory_space<vmem>>, %arg4: memref<8x256xf32, #tpu.memory_space<vmem>>, %arg5: memref<8x256xf32, #tpu.memory_space<vmem>>, %arg6: memref<8x1xf32, #tpu.memory_space<vmem>>) attributes {dimension_semantics = [#tpu.dimension_semantics<parallel>, #tpu.dimension_semantics<arbitrary>], iteration_bounds = array<i64: 1, 1>, scalar_prefetch = 0 : i64, scratch_operands = 0 : i64, tpu.core_type = #tpu.core_type<tc>, window_params = [{transform_indices = @transform_0, window_bounds = array<i64: 8, 256>}, {transform_indices = @transform_1, window_bounds = array<i64: 8, 256>}, {transform_indices = @transform_2, window_bounds = array<i64: 8, 256>}, {transform_indices = @transform_3, window_bounds = array<i64: 8, 256>}, {transform_indices = @transform_4, window_bounds = array<i64: 8, 1>}]} {
    %c0_i32 = arith.constant 0 : i32
    %0 = arith.cmpi eq, %arg1, %c0_i32 : i32
    %1 = arith.extui %0 : i1 to i32
    %c0_i32_0 = arith.constant 0 : i32
    %2 = arith.cmpi ne, %1, %c0_i32_0 : i32
    scf.if %2 {
      %cst_16 = arith.constant 0.000000e+00 : f32
      %29 = vector.broadcast %cst_16 : f32 to vector<8x1xf32>
      %c0_17 = arith.constant 0 : index
      %c0_18 = arith.constant 0 : index
      %30 = vector.load %arg6[%c0_17, %c0_18] : memref<8x1xf32, #tpu.memory_space<vmem>>, vector<8x1xf32>
      tpu.vector_store %arg6[%c0_17, %c0_18], %29 {strides = array<i32>} : memref<8x1xf32, #tpu.memory_space<vmem>>, vector<8x1xf32>,
    } else {
    }
    %c0 = arith.constant 0 : index
    %c0_1 = arith.constant 0 : index
    %3 = vector.load %arg2[%c0, %c0_1] : memref<8x256xf32, #tpu.memory_space<vmem>>, vector<8x256xf32>
    %c0_2 = arith.constant 0 : index
    %c0_3 = arith.constant 0 : index
    %4 = vector.load %arg3[%c0_2, %c0_3] : memref<8x256xf32, #tpu.memory_space<vmem>>, vector<8x256xf32>
    %c0_4 = arith.constant 0 : index
    %c0_5 = arith.constant 0 : index
    %5 = vector.load %arg4[%c0_4, %c0_5] : memref<8x256xf32, #tpu.memory_space<vmem>>, vector<8x256xf32>
    %c0_6 = arith.constant 0 : index
    %c0_7 = arith.constant 0 : index
    %6 = vector.load %arg5[%c0_6, %c0_7] : memref<8x256xf32, #tpu.memory_space<vmem>>, vector<8x256xf32>
    %cst = arith.constant 1.000000e-10 : f32
    %7 = vector.broadcast %cst : f32 to vector<8x256xf32>
    %8 = arith.addf %6, %7 : vector<8x256xf32>
    %9 = tpu.reciprocal %8 : vector<8x256xf32> -> vector<8x256xf32>
    %10 = arith.subf %3, %4 : vector<8x256xf32>
    %11 = arith.mulf %10, %9 : vector<8x256xf32>
    %12 = arith.mulf %5, %9 : vector<8x256xf32>
    %13 = arith.mulf %11, %11 : vector<8x256xf32>
    %14 = arith.mulf %12, %12 : vector<8x256xf32>
    %15 = arith.addf %13, %14 : vector<8x256xf32>
    %cst_8 = arith.constant 5.000000e-01 : f32
    %16 = vector.broadcast %cst_8 : f32 to vector<8x256xf32>
    %17 = arith.mulf %16, %15 : vector<8x256xf32>
    %cst_9 = arith.constant 5.000000e-01 : f32
    %18 = vector.broadcast %cst_9 : f32 to vector<8x256xf32>
    %19 = arith.subf %17, %18 : vector<8x256xf32>
    %cst_10 = arith.constant 1.000000e-10 : f32
    %20 = vector.broadcast %cst_10 : f32 to vector<8x256xf32>
    %21 = arith.addf %12, %20 : vector<8x256xf32>
    %22 = math.log %21 : vector<8x256xf32>
    %23 = arith.subf %19, %22 : vector<8x256xf32>
    %c0_11 = arith.constant 0 : index
    %c0_12 = arith.constant 0 : index
    %24 = vector.load %arg6[%c0_11, %c0_12] : memref<8x1xf32, #tpu.memory_space<vmem>>, vector<8x1xf32>
    %cst_13 = arith.constant dense<0.000000e+00> : vector<8xf32>
    %25 = vector.multi_reduction <add>, %23, %cst_13 [1] : vector<8x256xf32> to vector<8xf32>
    %26 = vector.shape_cast %25 : vector<8xf32> to vector<8x1xf32>
    %27 = arith.addf %24, %26 : vector<8x1xf32>
    %c0_14 = arith.constant 0 : index
    %c0_15 = arith.constant 0 : index
    %28 = vector.load %arg6[%c0_14, %c0_15] : memref<8x1xf32, #tpu.memory_space<vmem>>, vector<8x1xf32>
    tpu.vector_store %arg6[%c0_14, %c0_15], %27 {strides = array<i32>} : memref<8x1xf32, #tpu.memory_space<vmem>>, vector<8x1xf32>,
    return
  }
  func.func @transform_0(%arg0: i32, %arg1: i32) -> (i32, i32) {
    %c0_i32 = arith.constant 0 : i32
    return %arg0, %arg1 : i32, i32
  }
  func.func @transform_1(%arg0: i32, %arg1: i32) -> (i32, i32) {
    %c0_i32 = arith.constant 0 : i32
    return %arg0, %arg1 : i32, i32
  }
  func.func @transform_2(%arg0: i32, %arg1: i32) -> (i32, i32) {
    %c0_i32 = arith.constant 0 : i32
    return %arg0, %arg1 : i32, i32
  }
  func.func @transform_3(%arg0: i32, %arg1: i32) -> (i32, i32) {
    %c0_i32 = arith.constant 0 : i32
    return %arg0, %arg1 : i32, i32
  }
  func.func @transform_4(%arg0: i32, %arg1: i32) -> (i32, i32) {
    %c0_i32 = arith.constant 0 : i32
    %c0_i32_0 = arith.constant 0 : i32
    return %arg0, %c0_i32 : i32, i32
  }
}

</mosaic_0001>

<llo_original>
// kernel: tpu_custom_call.1
$region0: #{tpu_custom_call.1}
  #allocation0 [shape = 'u32[]', space=smem, size = 0x4, offset = 0x4, fixed_abs, tag = 'smem constant byte address 0x4 - core index']
  #allocation1 [shape = 'u32[144,128]{1,0:T(1,128)}', space=vmem, size = 0x12000, scoped, tag = 'internal scratch']
  %s0 = inlined_call_operand.hbm [shape: f32[8,256], index: 0, kind: input, shape index: {}]
  %s1 = inlined_call_operand.hbm [shape: f32[8,256], index: 1, kind: input, shape index: {}]
  %s2 = inlined_call_operand.hbm [shape: f32[8,256], index: 2, kind: input, shape index: {}]
  %s3 = inlined_call_operand.hbm [shape: f32[8,256], index: 3, kind: input, shape index: {}]
  %s4 = inlined_call_operand.vmem [shape: f32[8,1], index: 4, kind: output, shape index: {}]
  %s5 = sld [smem:[#allocation0]]
  $region46: #{tpu_custom_call.1} parent=0
    _
  %s7 = ssub.s32 1, %s5
  %s8 = scalar_select 0, %s7, %s5
  $region1: #{tpu_custom_call.1} parent=0
    #allocation2 [shape = 'u8[8192]{0}', space=vmem, size = 0x2000, scoped, tag = 'input window, operand 0, single buffered']
    #allocation3 [shape = 's32[1]{0}', space=sflag, size = 0x4, scoped, tag = 'scoped memory for tpu_custom_call.1']
    #allocation4 [shape = 'u8[8192]{0}', space=vmem, size = 0x2000, scoped, tag = 'input window, operand 1, single buffered']
    #allocation5 [shape = 's32[1]{0}', space=sflag, size = 0x4, scoped, tag = 'scoped memory for tpu_custom_call.1']
    #allocation6 [shape = 'u8[8192]{0}', space=vmem, size = 0x2000, scoped, tag = 'input window, operand 2, single buffered']
    #allocation7 [shape = 'u8[8192]{0}', space=vmem, size = 0x2000, scoped, tag = 'input window, operand 3, single buffered']
    #allocation8 [shape = 's32[1]{0}', space=sflag, size = 0x4, scoped, tag = 'scoped memory for tpu_custom_call.1']
    %9 = vsyncpa [#allocation3], 0
    %10 = vsyncpa [#allocation5], 0
    %11 = vsyncpa [#allocation8], 0
    // Predicated region
    $region2: #{tpu_custom_call.1} parent=1 // pred_check
      _
    $region3: #{tpu_custom_call.1} parent=1 // pred_check_branch
      %13 = sbr.rel (0) target = $region5
    $region4: #{tpu_custom_call.1} parent=1 // pred_region
      %s15 = ssub.s32 256, 256
      %16 = vsyncadd [#allocation3], %s15
      %s18 = sshll.u32 [#allocation2], 4
      %s19 = int_to_ptr.vmem [resolvable:$true] %s18
      %21 = dma.hbm_to_vmem [thread:$0]  %s0, 256, %s19, [#allocation3]
    $region5: #{tpu_custom_call.1} parent=1 // pred_fallthru
      _
    // Predicated region
    $region6: #{tpu_custom_call.1} parent=1 // pred_check
      _
    $region7: #{tpu_custom_call.1} parent=1 // pred_check_branch
      %23 = sbr.rel (0) target = $region9
    $region8: #{tpu_custom_call.1} parent=1 // pred_region
      %s25 = ssub.s32 256, 256
      %26 = vsyncadd [#allocation5], %s25
      %s28 = sshll.u32 [#allocation4], 4
      %s29 = int_to_ptr.vmem [resolvable:$true] %s28
      %31 = dma.hbm_to_vmem [thread:$0]  %s1, 256, %s29, [#allocation5]
    $region9: #{tpu_custom_call.1} parent=1 // pred_fallthru
      _
    // Predicated region
    $region10: #{tpu_custom_call.1} parent=1 // pred_check
      _
    $region11: #{tpu_custom_call.1} parent=1 // pred_check_branch
      %33 = sbr.rel (0) target = $region13
    $region12: #{tpu_custom_call.1} parent=1 // pred_region
      %s35 = ssub.s32 256, 256
      %36 = vsyncadd [#allocation5], %s35
      %s38 = sshll.u32 [#allocation6], 4
      %s39 = int_to_ptr.vmem [resolvable:$true] %s38
      %41 = dma.hbm_to_vmem [thread:$0]  %s2, 256, %s39, [#allocation5]
    $region13: #{tpu_custom_call.1} parent=1 // pred_fallthru
      _
    // Predicated region
    $region14: #{tpu_custom_call.1} parent=1 // pred_check
      _
    $region15: #{tpu_custom_call.1} parent=1 // pred_check_branch
      %43 = sbr.rel (0) target = $region17
    $region16: #{tpu_custom_call.1} parent=1 // pred_region
      %s45 = ssub.s32 256, 256
      %46 = vsyncadd [#allocation8], %s45
      %s48 = sshll.u32 [#allocation7], 4
      %s49 = int_to_ptr.vmem [resolvable:$true] %s48
      %51 = dma.hbm_to_vmem [thread:$0]  %s3, 256, %s49, [#allocation8]
    $region17: #{tpu_custom_call.1} parent=1 // pred_fallthru
      _
    // Predicated region
    $region18: #{tpu_custom_call.1} parent=1 // pred_check
      _
    $region19: #{tpu_custom_call.1} parent=1 // pred_check_branch
      %53 = sbr.rel (0) target = $region21
    $region20: #{tpu_custom_call.1} parent=1 // pred_region
      %54 = dma.done [#allocation3], 256
    $region21: #{tpu_custom_call.1} parent=1 // pred_fallthru
      _
    // Predicated region
    $region22: #{tpu_custom_call.1} parent=1 // pred_check
      _
    $region23: #{tpu_custom_call.1} parent=1 // pred_check_branch
      %56 = sbr.rel (0) target = $region25
    $region24: #{tpu_custom_call.1} parent=1 // pred_region
      %57 = dma.done [#allocation5], 256
    $region25: #{tpu_custom_call.1} parent=1 // pred_fallthru
      _
    // Predicated region
    $region26: #{tpu_custom_call.1} parent=1 // pred_check
      _
    $region27: #{tpu_custom_call.1} parent=1 // pred_check_branch
      %59 = sbr.rel (0) target = $region29
    $region28: #{tpu_custom_call.1} parent=1 // pred_region
      %60 = dma.done [#allocation5], 256
    $region29: #{tpu_custom_call.1} parent=1 // pred_fallthru
      _
    // Predicated region
    $region30: #{tpu_custom_call.1} parent=1 // pred_check
      _
    $region31: #{tpu_custom_call.1} parent=1 // pred_check_branch
      %62 = sbr.rel (0) target = $region33
    $region32: #{tpu_custom_call.1} parent=1 // pred_region
      %63 = dma.done [#allocation8], 256
    $region33: #{tpu_custom_call.1} parent=1 // pred_fallthru
      _
    %p64 = scmp.eq.s32.totalorder 0, 0
    // Predicated region
    $region34: #{tpu_custom_call.1} parent=1 // pred_check
      %p65 = pneg %p64
    $region35: #{tpu_custom_call.1} parent=1 // pred_check_branch
      %67 = sbr.rel (%p65) target = $region37
    $region36: #{tpu_custom_call.1} parent=1 // pred_region
      %vm68 = vcmask 7168
      %69 = vst.msk [vmem:[%s4] sm:$0xff] %vm68, 0.0
    $region37: #{tpu_custom_call.1} parent=1 // pred_fallthru
      _
    %v70 = vld [vmem:[#allocation2] sm:$0xff]
    %v71 = vld [vmem:[#allocation2 + $0x8] sm:$0xff]
    %v72 = vld [vmem:[#allocation4] sm:$0xff]
    %v73 = vld [vmem:[#allocation4 + $0x8] sm:$0xff]
    %v74 = vld [vmem:[#allocation6] sm:$0xff]
    %v75 = vld [vmem:[#allocation6 + $0x8] sm:$0xff]
    %v76 = vld [vmem:[#allocation7] sm:$0xff]
    %v77 = vld [vmem:[#allocation7 + $0x8] sm:$0xff]
    %v78 = vadd.f32 %v76, 1e-10
    %v79 = vadd.f32 %v77, 1e-10
    %v80 = vrcp.pop %v78
    %v81 = vrcp.pop %v79
    %v82 = vsub.f32 %v70, %v72
    %v83 = vsub.f32 %v71, %v73
    %v84 = vmul.f32 %v82, %v80
    %v85 = vmul.f32 %v83, %v81
    %v86 = vmul.f32 %v74, %v80
    %v87 = vmul.f32 %v75, %v81
    %v88 = vmul.f32 %v84, %v84
    %v89 = vmul.f32 %v85, %v85
    %v90 = vmul.f32 %v86, %v86
    %v91 = vmul.f32 %v87, %v87
    %v92 = vadd.f32 %v88, %v90
    %v93 = vadd.f32 %v89, %v91
    %v94 = vmul.f32 %v92, 0.5
    %v95 = vmul.f32 %v93, 0.5
    %v96 = vsub.f32 %v94, 0.5
    %v97 = vsub.f32 %v95, 0.5
    %v98 = vadd.f32 %v86, 1e-10
    %v99 = vadd.f32 %v87, 1e-10
    %v100 = vlog2.pop %v98
    %v101 = vmul.f32 %v100, 0.6931472
    %v102 = vlog2.pop %v99
    %v103 = vmul.f32 %v102, 0.6931472
    %v104 = vsub.f32 %v96, %v101
    %v105 = vsub.f32 %v97, %v103
    %v106 = vld [vmem:[%s4] sm:$0xff]
    %v107 = vadd.f32 %v104, %v105
    %108 = vadd.xlane.f32.xlu0 %v107
    %v109 = vpop.xlane.xlu0 %108
    %v110 = vadd.f32 %v106, %v109
    %vm111 = vcmask 7168
    %112 = vst.msk [vmem:[%s4] sm:$0xff] %vm111, %v110
    // Predicated region
    $region38: #{tpu_custom_call.1} parent=1 // pred_check
      _
    $region39: #{tpu_custom_call.1} parent=1 // pred_check_branch
      %114 = sbr.rel (0) target = $region41
    $region40: #{tpu_custom_call.1} parent=1 // pred_region
      _
    $region41: #{tpu_custom_call.1} parent=1 // pred_fallthru
      _
    // Predicated region
    $region42: #{tpu_custom_call.1} parent=1 // pred_check
      _
    $region43: #{tpu_custom_call.1} parent=1 // pred_check_branch
      %116 = sbr.rel (0) target = $region45
    $region44: #{tpu_custom_call.1} parent=1 // pred_region
      _
    $region45: #{tpu_custom_call.1} parent=1 // pred_fallthru
      _
    %117 = vsyncpa [#allocation3], 1
    %118 = vsyncpa [#allocation5], 1
    %119 = vsyncpa [#allocation8], 1

</llo_original>
